<compile_context>
chip_gen: v6e
topology: v6e:2x2x1
jax: 0.10.0
libtpu: 0.0.40
codegen_flags: <defaults>
</compile_context>

<pallas_src>
import functools
import numpy as np
import jax
import jax.numpy as jnp
from jax import lax
from jax.experimental import pallas as pl
from jax.experimental.pallas import tpu as pltpu  # noqa: F401  (TPU backend)


# ----------------------------- Pallas kernel --------------------------------
def _mha_kernel(q_ref, k_ref, v_ref, w_ref, mask_ref, out_ref, attn_ref, *,
                n_head, n_batch, seq_len, inv_temperature):
    """Packed MHA forward in one invocation.

    q_ref/k_ref/v_ref: (S, d) with S = B*H*L, row index = (b*H + h)*L + l
    w_ref:             (S, S) block-diagonal tanh(positional weights), 0 off-block
    mask_ref:          (S, S) additive mask, 0 on (b,h) blocks, -1e30 off-block
    out_ref:           (S, d_v) packed per-head outputs
    attn_ref:          (L, L) last head's attention, averaged over batch
    """
    q = q_ref[...].astype(jnp.float32) * inv_temperature   # scale folded once
    k = k_ref[...].astype(jnp.float32)
    v = v_ref[...].astype(jnp.float32)

    # All B*H score blocks in ONE MXU pass: scores[i, j] = q[i] . k[j]
    # (contract last dims directly, no k transpose).
    scores = lax.dot_general(
        q, k, dimension_numbers=(((1,), (1,)), ((), ())),
        preferred_element_type=jnp.float32)                 # (S, S)
    scores = scores + mask_ref[...]                         # off-block -> -1e30

    # Plain row softmax == per-(b, h) softmax: masked columns underflow to 0.
    m = jnp.max(scores, axis=-1, keepdims=True)
    e = jnp.exp(scores - m)
    denom = jnp.sum(e, axis=-1, keepdims=True)
    inv = pl.reciprocal(denom, approx=True)                 # EUP slot (free)

    # Unnormalized positional-weighted attention.  Exactly 0 off-block
    # (w is 0 there and exp underflowed to 0), so the packed matmul below is
    # exactly the block-diagonal per-(b, h) product.  Normalization is
    # deferred past the matmul (row scaling commutes through attn @ v), so
    # sum/reciprocal are off the matmul's critical path.
    wu = w_ref[...] * e                                     # (S, S)

    # All B*H weighted value sums in ONE MXU pass, then normalize rows.
    out = jnp.dot(wu, v, preferred_element_type=jnp.float32)   # (S, d_v)
    out_ref[...] = (out * inv).astype(out_ref.dtype)            # single store

    # torch returns the LAST head's attn, averaged over the batch dim.
    acc = None
    for b in range(n_batch):                                # static unroll
        r0 = (b * n_head + (n_head - 1)) * seq_len
        blk = wu[r0:r0 + seq_len, r0:r0 + seq_len] * inv[r0:r0 + seq_len, :]
        acc = blk if acc is None else acc + blk
    attn_ref[...] = (acc * (1.0 / n_batch)).astype(attn_ref.dtype)


# ---------------------------- parameter / glue -------------------------------
def build_attn_weight_matrices(scalars, N, K):
    """Vectorized equivalent of ScaledDotProductAttention.get_attn_weight.

    scalars: (n_head, 6)
      [same_sample, same_class, diff_class, s_to_query, query_to_s, query]
    NOTE: every output entry equals exactly ONE of the 6 scalars (pure
    selection, no sums), which is what makes hoisting tanh onto the scalars
    equivalent to tanh of the built matrix.  Keep it that way.
    returns (n_head, N*K+1, N*K+1)
    """
    L = N * K + 1
    r = jnp.arange(L)[:, None]
    c = jnp.arange(L)[None, :]

    def one_head(w):
        w_ss, w_sc, w_dc, w_s2q, w_q2s, w_q = (w[i] for i in range(6))
        M = jnp.full((L, L), w_dc)
        M = jnp.where(c == L - 1, w_s2q, M)
        M = jnp.where((c // K) == (r // K), w_sc, M)
        M = jnp.where(c == r, w_ss, M)
        M = jnp.where(r == L - 1, jnp.where(c == L - 1, w_q, w_q2s), M)
        return M

    return jax.vmap(one_head)(scalars)


def multi_head_attention(q, k, v, N, K, attn_weight, n_head, d_k, d_v, query=True):
    """q, k, v: (B, L, d_model) with d_model = n_head*d_k; returns
    (output (B,L,d_model), attn_mean (L,L), pre_residual (B,L,d_model))."""
    B, Lq, d_model = q.shape
    assert d_model == n_head * d_k == n_head * d_v

    # tanh hoisted out of the kernel (valid: selection-only matrix, see above).
    w_heads = build_attn_weight_matrices(jnp.tanh(attn_weight), N, K)
    if not query:
        w_heads = w_heads[:, :-1, :-1]
    assert w_heads.shape[-1] == Lq, "seq_len must equal N*K+1 (query) or N*K"

    S = B * n_head * Lq

    # Block-diagonal packed positional weights: block g = (b*H + h) is
    # tanh(W_h); 0 off-block.
    w_blocks = jnp.tile(w_heads.astype(jnp.float32), (B, 1, 1))       # (B*H, L, L)
    eye_g = jnp.eye(B * n_head, dtype=jnp.float32)
    w_packed = jnp.einsum('gp,glk->glpk', eye_g, w_blocks).reshape(S, S)

    # Additive mask: 0 within a (b, h) block, -1e30 across blocks (constant).
    blk_id = jnp.arange(S) // Lq
    mask = jnp.where(blk_id[:, None] == blk_id[None, :],
                     0.0, -1e30).astype(jnp.float32)

    def pack(x, d):   # (B, L, H*d) -> (B*H*L, d), row index = (b*H + h)*L + l
        return x.reshape(B, Lq, n_head, d).transpose(0, 2, 1, 3).reshape(S, d)

    q_p, k_p, v_p = pack(q, d_k), pack(k, d_k), pack(v, d_v)

    kernel = functools.partial(
        _mha_kernel, n_head=n_head, n_batch=B, seq_len=Lq,
        inv_temperature=float(1.0 / np.sqrt(d_k)))

    # Single invocation (no grid): all operands fit trivially in VMEM at these
    # shapes, so default full-array blocks are used (no pipelining overhead).
    out_packed, attn_mean = pl.pallas_call(
        kernel,
        out_shape=[
            jax.ShapeDtypeStruct((S, d_v), jnp.float32),
            jax.ShapeDtypeStruct((Lq, Lq), jnp.float32),
        ],
    )(q_p, k_p, v_p, w_packed, mask)

    # Unpack (wrapper-side layout plumbing): (B*H*L, d_v) -> (B, L, H*d_v).
    output = (out_packed.reshape(B, n_head, Lq, d_v)
              .transpose(0, 2, 1, 3).reshape(B, Lq, d_model))
    pre_residual = output
    return output, attn_mean, pre_residual


# ---------------------- pure-JAX reference (sanity) ---------------------------
def _reference(q, k, v, N, K, attn_weight, n_head, d_k, d_v):
    B, L, d_model = q.shape
    qh = jnp.transpose(q.reshape(B, L, n_head, d_k), (2, 0, 1, 3))
    kh = jnp.transpose(k.reshape(B, L, n_head, d_k), (2, 0, 1, 3))
    vh = jnp.transpose(v.reshape(B, L, n_head, d_v), (2, 0, 1, 3))
    w_mats = build_attn_weight_matrices(attn_weight, N, K)
    scores = jnp.einsum("hbqd,hbkd->hbqk", qh, kh) / np.sqrt(d_k)
    p = jax.nn.softmax(scores, axis=-1)
    a = jnp.tanh(w_mats)[:, None] * p
    out_h = jnp.einsum("hbqk,hbkd->hbqd", a, vh)
    output = jnp.transpose(out_h, (1, 2, 0, 3)).reshape(B, L, d_model)
    return output, jnp.mean(a[-1], axis=0)


if __name__ == "__main__":
    # small, module-consistent shapes
    n_head, d_k, d_v = 4, 8, 8
    d_model = n_head * d_k          # 32
    N, K = 2, 3                     # episode: N classes, K shots
    L = N * K + 1                   # 7 (support set + query)
    B = 2

    key = jax.random.PRNGKey(0)
    kq, kk, kv, kw = jax.random.split(key, 4)
    q = jax.random.normal(kq, (B, L, d_model), dtype=jnp.float32)
    k = jax.random.normal(kk, (B, L, d_model), dtype=jnp.float32)
    v = jax.random.normal(kv, (B, L, d_model), dtype=jnp.float32)

    # per-head attn_weight (6,) ~ xavier_uniform with tanh gain, deterministic
    gain = 5.0 / 3.0
    bound = gain * np.sqrt(6.0 / (6 + 1))
    attn_weight = jax.random.uniform(
        kw, (n_head, 6), minval=-bound, maxval=bound, dtype=jnp.float32
    )

    # Guard for the tanh hoist: build-then-tanh == tanh-then-build (selection
    # only construction).  If build_attn_weight_matrices ever sums terms this
    # will catch it.
    np.testing.assert_allclose(
        np.tanh(np.asarray(build_attn_weight_matrices(attn_weight, N, K))),
        np.asarray(build_attn_weight_matrices(jnp.tanh(attn_weight), N, K)),
        atol=1e-6, rtol=1e-6)

    output, attn_mean, pre_residual = jax.jit(
        lambda q, k, v, w: multi_head_attention(
            q, k, v, N, K, w, n_head, d_k, d_v, query=True
        )
    )(q, k, v, attn_weight)
    jax.block_until_ready((output, attn_mean, pre_residual))

    ref_out, ref_attn = _reference(q, k, v, N, K, attn_weight, n_head, d_k, d_v)
    # Tolerances relaxed (1e-5 -> 2e-3) because the softmax denominator uses
    # the EUP approximate reciprocal (~1e-4 relative), per the perf review.
    np.testing.assert_allclose(np.asarray(output), np.asarray(ref_out),
                               atol=2e-3, rtol=2e-3)
    np.testing.assert_allclose(np.asarray(attn_mean), np.asarray(ref_attn),
                               atol=2e-3, rtol=2e-3)
    np.testing.assert_allclose(np.asarray(pre_residual), np.asarray(ref_out),
                               atol=2e-3, rtol=2e-3)

    print("KERNEL_OK")
</pallas_src>

<mosaic_0001>
module attributes {stable_mosaic.version = 11 : i64} {
  func.func @_mha_kernel(%arg0: memref<56x8xf32, #tpu.memory_space<vmem>>, %arg1: memref<56x8xf32, #tpu.memory_space<vmem>>, %arg2: memref<56x8xf32, #tpu.memory_space<vmem>>, %arg3: memref<56x56xf32, #tpu.memory_space<vmem>>, %arg4: memref<56x56xf32, #tpu.memory_space<vmem>>, %arg5: memref<56x8xf32, #tpu.memory_space<vmem>>, %arg6: memref<7x7xf32, #tpu.memory_space<vmem>>) attributes {dimension_semantics = [], scalar_prefetch = 0 : i64, scratch_operands = 0 : i64, tpu.core_type = #tpu.core_type<tc>} {
    %c0 = arith.constant 0 : index
    %c0_0 = arith.constant 0 : index
    %0 = vector.load %arg0[%c0, %c0_0] : memref<56x8xf32, #tpu.memory_space<vmem>>, vector<56x8xf32>
    %cst = arith.constant 0.353553385 : f32
    %1 = vector.broadcast %cst : f32 to vector<56x8xf32>
    %2 = arith.mulf %0, %1 : vector<56x8xf32>
    %c0_1 = arith.constant 0 : index
    %c0_2 = arith.constant 0 : index
    %3 = vector.load %arg1[%c0_1, %c0_2] : memref<56x8xf32, #tpu.memory_space<vmem>>, vector<56x8xf32>
    %c0_3 = arith.constant 0 : index
    %c0_4 = arith.constant 0 : index
    %4 = vector.load %arg2[%c0_3, %c0_4] : memref<56x8xf32, #tpu.memory_space<vmem>>, vector<56x8xf32>
    %cst_5 = arith.constant dense<0.000000e+00> : vector<56x56xf32>
    %5 = tpu.matmul %2, %3, %cst_5 {dimension_numbers = #tpu.dot_dimension_numbers<[1], [1], [0], [0], [0, 0, 1, 0], [], []>} : vector<56x8xf32>, vector<56x8xf32>, vector<56x56xf32> -> vector<56x56xf32>
    %c0_6 = arith.constant 0 : index
    %c0_7 = arith.constant 0 : index
    %6 = vector.load %arg4[%c0_6, %c0_7] : memref<56x56xf32, #tpu.memory_space<vmem>>, vector<56x56xf32>
    %7 = arith.addf %5, %6 : vector<56x56xf32>
    %cst_8 = arith.constant dense<0xFF800000> : vector<56xf32>
    %8 = vector.multi_reduction <maximumf>, %7, %cst_8 [1] : vector<56x56xf32> to vector<56xf32>
    %9 = vector.shape_cast %8 : vector<56xf32> to vector<56x1xf32>
    %10 = vector.broadcast %9 : vector<56x1xf32> to vector<56x56xf32>
    %11 = arith.subf %7, %10 : vector<56x56xf32>
    %12 = math.exp %11 : vector<56x56xf32>
    %cst_9 = arith.constant dense<0.000000e+00> : vector<56xf32>
    %13 = vector.multi_reduction <add>, %12, %cst_9 [1] : vector<56x56xf32> to vector<56xf32>
    %14 = vector.shape_cast %13 : vector<56xf32> to vector<56x1xf32>
    %15 = tpu.reciprocal %14 {approx = true} : vector<56x1xf32> -> vector<56x1xf32>
    %c0_10 = arith.constant 0 : index
    %c0_11 = arith.constant 0 : index
    %16 = vector.load %arg3[%c0_10, %c0_11] : memref<56x56xf32, #tpu.memory_space<vmem>>, vector<56x56xf32>
    %17 = arith.mulf %16, %12 : vector<56x56xf32>
    %cst_12 = arith.constant dense<0.000000e+00> : vector<56x8xf32>
    %18 = tpu.matmul %17, %4, %cst_12 {dimension_numbers = #tpu.dot_dimension_numbers<[1], [0], [0], [1], [0, 0, 1, 1], [], []>} : vector<56x56xf32>, vector<56x8xf32>, vector<56x8xf32> -> vector<56x8xf32>
    %19 = vector.broadcast %15 : vector<56x1xf32> to vector<56x8xf32>
    %20 = arith.mulf %18, %19 : vector<56x8xf32>
    %c0_13 = arith.constant 0 : index
    %c0_14 = arith.constant 0 : index
    %21 = vector.load %arg5[%c0_13, %c0_14] : memref<56x8xf32, #tpu.memory_space<vmem>>, vector<56x8xf32>
    tpu.vector_store %arg5[%c0_13, %c0_14], %20 {strides = array<i32>} : memref<56x8xf32, #tpu.memory_space<vmem>>, vector<56x8xf32>,
    %22 = vector.extract_strided_slice %17 {offsets = [21, 21], sizes = [7, 7], strides = [1, 1]} : vector<56x56xf32> to vector<7x7xf32>
    %23 = vector.extract_strided_slice %15 {offsets = [21, 0], sizes = [7, 1], strides = [1, 1]} : vector<56x1xf32> to vector<7x1xf32>
    %24 = vector.broadcast %23 : vector<7x1xf32> to vector<7x7xf32>
    %25 = arith.mulf %22, %24 : vector<7x7xf32>
    %26 = vector.extract_strided_slice %17 {offsets = [49, 49], sizes = [7, 7], strides = [1, 1]} : vector<56x56xf32> to vector<7x7xf32>
    %27 = vector.extract_strided_slice %15 {offsets = [49, 0], sizes = [7, 1], strides = [1, 1]} : vector<56x1xf32> to vector<7x1xf32>
    %28 = vector.broadcast %27 : vector<7x1xf32> to vector<7x7xf32>
    %29 = arith.mulf %26, %28 : vector<7x7xf32>
    %30 = arith.addf %25, %29 : vector<7x7xf32>
    %cst_15 = arith.constant 5.000000e-01 : f32
    %31 = vector.broadcast %cst_15 : f32 to vector<7x7xf32>
    %32 = arith.mulf %30, %31 : vector<7x7xf32>
    %c0_16 = arith.constant 0 : index
    %c0_17 = arith.constant 0 : index
    %33 = vector.load %arg6[%c0_16, %c0_17] : memref<7x7xf32, #tpu.memory_space<vmem>>, vector<7x7xf32>
    tpu.vector_store %arg6[%c0_16, %c0_17], %32 {strides = array<i32>} : memref<7x7xf32, #tpu.memory_space<vmem>>, vector<7x7xf32>,
    return
  }
}

</mosaic_0001>

<llo_original>
// kernel: _lambda_.1
$region0: #{_lambda_.1}
  #allocation0 [shape = 'u32[]', space=smem, size = 0x4, offset = 0x4, fixed_abs, tag = 'smem constant byte address 0x4 - core index']
  #allocation1 [shape = 'u32[144,128]{1,0:T(1,128)}', space=vmem, size = 0x12000, scoped, tag = 'internal scratch']
  %s0 = inlined_call_operand.vmem [shape: f32[56,8], index: 0, kind: input, shape index: {}]
  %s1 = inlined_call_operand.vmem [shape: f32[56,8], index: 1, kind: input, shape index: {}]
  %s2 = inlined_call_operand.vmem [shape: f32[56,8], index: 2, kind: input, shape index: {}]
  %s3 = inlined_call_operand.vmem [shape: f32[56,56], index: 3, kind: input, shape index: {}]
  %s4 = inlined_call_operand.vmem [shape: f32[56,56], index: 4, kind: input, shape index: {}]
  %s5 = inlined_call_operand.vmem [shape: f32[56,8], index: 5, kind: output, shape index: {0}]
  %s6 = inlined_call_operand.hbm [shape: f32[7,7], index: 6, kind: output, shape index: {1}]
  %7 = xla_tuple %s5, %s6
  %s8 = sld [smem:[#allocation0]]
  $region38: #{_lambda_.1} parent=0
    _
  %s10 = ssub.s32 1, %s8
  %s11 = scalar_select 0, %s10, %s8
  $region1: #{_lambda_.1} parent=0
    #allocation2 [shape = 'u8[4096]{0}', space=vmem, size = 0x1000, scoped, tag = 'output window, operand 1, single buffered']
    #allocation3 [shape = 's32[1]{0}', space=sflag, size = 0x4, scoped, tag = 'scoped memory for _lambda_.1']
    %12 = vsyncpa [#allocation3], 0
    // Predicated region
    $region2: #{_lambda_.1} parent=1 // pred_check
      _
    $region3: #{_lambda_.1} parent=1 // pred_check_branch
      %14 = sbr.rel (0) target = $region5
    $region4: #{_lambda_.1} parent=1 // pred_region
      _
    $region5: #{_lambda_.1} parent=1 // pred_fallthru
      _
    // Predicated region
    $region6: #{_lambda_.1} parent=1 // pred_check
      _
    $region7: #{_lambda_.1} parent=1 // pred_check_branch
      %16 = sbr.rel (0) target = $region9
    $region8: #{_lambda_.1} parent=1 // pred_region
      _
    $region9: #{_lambda_.1} parent=1 // pred_fallthru
      _
    // Predicated region
    $region10: #{_lambda_.1} parent=1 // pred_check
      _
    $region11: #{_lambda_.1} parent=1 // pred_check_branch
      %18 = sbr.rel (0) target = $region13
    $region12: #{_lambda_.1} parent=1 // pred_region
      _
    $region13: #{_lambda_.1} parent=1 // pred_fallthru
      _
    // Predicated region
    $region14: #{_lambda_.1} parent=1 // pred_check
      _
    $region15: #{_lambda_.1} parent=1 // pred_check_branch
      %20 = sbr.rel (0) target = $region17
    $region16: #{_lambda_.1} parent=1 // pred_region
      _
    $region17: #{_lambda_.1} parent=1 // pred_fallthru
      _
    // Predicated region
    $region18: #{_lambda_.1} parent=1 // pred_check
      _
    $region19: #{_lambda_.1} parent=1 // pred_check_branch
      %22 = sbr.rel (0) target = $region21
    $region20: #{_lambda_.1} parent=1 // pred_region
      _
    $region21: #{_lambda_.1} parent=1 // pred_fallthru
      _
    %v23 = vld [vmem:[%s0] sm:$0xff]
    %v24 = vld [vmem:[%s0 + $0x8] sm:$0xff]
    %v25 = vld [vmem:[%s0 + $0x10] sm:$0xff]
    %v26 = vld [vmem:[%s0 + $0x18] sm:$0xff]
    %v27 = vld [vmem:[%s0 + $0x20] sm:$0xff]
    %v28 = vld [vmem:[%s0 + $0x28] sm:$0xff]
    %v29 = vld [vmem:[%s0 + $0x30] sm:$0xff]
    %v30 = vmul.f32 %v23, 0.35355338
    %v31 = vmul.f32 %v24, 0.35355338
    %v32 = vmul.f32 %v25, 0.35355338
    %v33 = vmul.f32 %v26, 0.35355338
    %v34 = vmul.f32 %v27, 0.35355338
    %v35 = vmul.f32 %v28, 0.35355338
    %v36 = vmul.f32 %v29, 0.35355338
    %v37 = vld [vmem:[%s1] sm:$0xff]
    %v38 = vld [vmem:[%s1 + $0x8] sm:$0xff]
    %v39 = vld [vmem:[%s1 + $0x10] sm:$0xff]
    %v40 = vld [vmem:[%s1 + $0x18] sm:$0xff]
    %v41 = vld [vmem:[%s1 + $0x20] sm:$0xff]
    %v42 = vld [vmem:[%s1 + $0x28] sm:$0xff]
    %v43 = vld [vmem:[%s1 + $0x30] sm:$0xff]
    %v44 = vld [vmem:[%s2] sm:$0xff]
    %v45 = vld [vmem:[%s2 + $0x8] sm:$0xff]
    %v46 = vld [vmem:[%s2 + $0x10] sm:$0xff]
    %v47 = vld [vmem:[%s2 + $0x18] sm:$0xff]
    %v48 = vld [vmem:[%s2 + $0x20] sm:$0xff]
    %v49 = vld [vmem:[%s2 + $0x28] sm:$0xff]
    %v50 = vld [vmem:[%s2 + $0x30] sm:$0xff]
    %v51 = vld [vmem:[%s4] sm:$0xff]
    %v52 = vld [vmem:[%s4 + $0x8] sm:$0xff]
    %v53 = vld [vmem:[%s4 + $0x10] sm:$0xff]
    %v54 = vld [vmem:[%s4 + $0x18] sm:$0xff]
    %v55 = vld [vmem:[%s4 + $0x20] sm:$0xff]
    %v56 = vld [vmem:[%s4 + $0x28] sm:$0xff]
    %v57 = vld [vmem:[%s4 + $0x30] sm:$0xff]
    %vm58 = vcmask 64512
    %v60 = vsel %vm58, %v30, 0
    %v63 = vsel %vm58, %v31, 0
    %v66 = vsel %vm58, %v32, 0
    %v69 = vsel %vm58, %v33, 0
    %v72 = vsel %vm58, %v34, 0
    %v75 = vsel %vm58, %v35, 0
    %v78 = vsel %vm58, %v36, 0
    %v81 = vsel %vm58, %v37, 0
    %v84 = vsel %vm58, %v38, 0
    %v87 = vsel %vm58, %v39, 0
    %v90 = vsel %vm58, %v40, 0
    %v93 = vsel %vm58, %v41, 0
    %v96 = vsel %vm58, %v42, 0
    %v99 = vsel %vm58, %v43, 0
    %101 = vmatprep.subr.mxu0 0.0
    %102 = vmatpush1.xpose.msra.mxu0 0.0
    %103 = vmatprep.subr.mxu0 0.0
    %104 = vmatpush1.xpose.msra.mxu0 0.0
    %105 = vmatprep.subr.mxu0 0.0
    %106 = vmatpush1.xpose.msra.mxu0 0.0
    %107 = vmatprep.subr.mxu0 0.0
    %108 = vmatpush1.xpose.msra.mxu0 0.0
    %109 = vmatprep.subr.mxu0 0.0
    %110 = vmatpush1.xpose.msra.mxu0 0.0
    %111 = vmatprep.subr.mxu0 0.0
    %112 = vmatpush1.xpose.msra.mxu0 0.0
    %113 = vmatprep.subr.mxu0 0.0
    %114 = vmatpush1.xpose.msra.mxu0 0.0
    %115 = vmatprep.subr.mxu0 0.0
    %116 = vmatpush1.xpose.msra.mxu0 0.0
    %117 = vmatprep.subr.mxu0 0.0
    %118 = vmatpush1.xpose.msra.mxu0 0.0
    %119 = vmatprep.subr.mxu0 0.0
    %120 = vmatpush1.xpose.msra.mxu0 %v99
    %121 = vmatprep.subr.mxu0 0.0
    %122 = vmatpush1.xpose.msra.mxu0 %v96
    %123 = vmatprep.subr.mxu0 0.0
    %124 = vmatpush1.xpose.msra.mxu0 %v93
    %125 = vmatprep.subr.mxu0 0.0
    %126 = vmatpush1.xpose.msra.mxu0 %v90
    %127 = vmatprep.subr.mxu0 0.0
    %128 = vmatpush1.xpose.msra.mxu0 %v87
    %129 = vmatprep.subr.mxu0 0.0
    %130 = vmatpush1.xpose.msra.mxu0 %v84
    %131 = vmatprep.subr.mxu0 0.0
    %132 = vmatpush1.xpose.msra.mxu0 %v81
    %133 = vmatprep.subr.mxu0 0.0
    %134 = vmatpush2.xpose.msra.mxu0 0.0
    %135 = vmatprep.subr.mxu0 0.0
    %136 = vmatpush2.xpose.msra.mxu0 0.0
    %137 = vmatprep.subr.mxu0 0.0
    %138 = vmatpush2.xpose.msra.mxu0 0.0
    %139 = vmatprep.subr.mxu0 0.0
    %140 = vmatpush2.xpose.msra.mxu0 0.0
    %141 = vmatprep.subr.mxu0 0.0
    %142 = vmatpush2.xpose.msra.mxu0 0.0
    %143 = vmatprep.subr.mxu0 0.0
    %144 = vmatpush2.xpose.msra.mxu0 0.0
    %145 = vmatprep.subr.mxu0 0.0
    %146 = vmatpush2.xpose.msra.mxu0 0.0
    %147 = vmatprep.subr.mxu0 0.0
    %148 = vmatpush2.xpose.msra.mxu0 0.0
    %149 = vmatprep.subr.mxu0 0.0
    %150 = vmatpush2.xpose.msra.mxu0 0.0
    %151 = vmatprep.subr.mxu0 0.0
    %152 = vmatpush2.xpose.msra.mxu0 0.0
    %153 = vmatprep.subr.mxu0 0.0
    %154 = vmatpush2.xpose.msra.mxu0 0.0
    %155 = vmatprep.subr.mxu0 0.0
    %156 = vmatpush2.xpose.msra.mxu0 0.0
    %157 = vmatprep.subr.mxu0 0.0
    %158 = vmatpush2.xpose.msra.mxu0 0.0
    %159 = vmatprep.subr.mxu0 0.0
    %160 = vmatpush2.xpose.msra.mxu0 0.0
    %161 = vmatprep.subr.mxu0 0.0
    %162 = vmatpush2.xpose.msra.mxu0 0.0
    %163 = vmatprep.subr.mxu0 0.0
    %164 = vmatpush2.xpose.msra.mxu0 0.0
    %165 = vmatprep.mubr.f32.mxu0 0.0
    %166 = vmatmul.mubr.f32.gmra.mxu0 %v60
    %v167 = vpop.f32.mrf.mxu0
    %v168 = vadd.f32 %v51, %v167
    %v169 = vpop.f32.mrf.mxu0
    %170 = vmatprep.mubr.f32.mxu0 0.0
    %171 = vmatmul.mubr.f32.gmra.mxu0 %v63
    %v172 = vpop.f32.mrf.mxu0
    %v173 = vadd.f32 %v52, %v172
    %v174 = vpop.f32.mrf.mxu0
    %175 = vmatprep.mubr.f32.mxu0 0.0
    %176 = vmatmul.mubr.f32.gmra.mxu0 %v66
    %v177 = vpop.f32.mrf.mxu0
    %v178 = vadd.f32 %v53, %v177
    %v179 = vpop.f32.mrf.mxu0
    %180 = vmatprep.mubr.f32.mxu0 0.0
    %181 = vmatmul.mubr.f32.gmra.mxu0 %v69
    %v182 = vpop.f32.mrf.mxu0
    %v183 = vadd.f32 %v54, %v182
    %v184 = vpop.f32.mrf.mxu0
    %185 = vmatprep.mubr.f32.mxu0 0.0
    %186 = vmatmul.mubr.f32.gmra.mxu0 %v72
    %v187 = vpop.f32.mrf.mxu0
    %v188 = vadd.f32 %v55, %v187
    %v189 = vpop.f32.mrf.mxu0
    %190 = vmatprep.mubr.f32.mxu0 0.0
    %191 = vmatmul.mubr.f32.gmra.mxu0 %v75
    %v192 = vpop.f32.mrf.mxu0
    %v193 = vadd.f32 %v56, %v192
    %v194 = vpop.f32.mrf.mxu0
    %195 = vmatprep.mubr.f32.mxu0 0.0
    %196 = vmatmul.mubr.f32.gmra.mxu0 %v78
    %v197 = vpop.f32.mrf.mxu0
    %v198 = vadd.f32 %v57, %v197
    %v199 = vpop.f32.mrf.mxu0
    %200 = vdwg.mxu0
    %vm201 = vcmask 457728
    %v202 = vsel %vm201, %v168, -inf
    %203 = vmax.xlane.f32.xlu0 %v202
    %v204 = vpop.xlane.xlu0 %203
    %v205 = vsel %vm201, %v173, -inf
    %206 = vmax.xlane.f32.xlu0 %v205
    %v207 = vpop.xlane.xlu0 %206
    %v208 = vsel %vm201, %v178, -inf
    %209 = vmax.xlane.f32.xlu0 %v208
    %v210 = vpop.xlane.xlu0 %209
    %v211 = vsel %vm201, %v183, -inf
    %212 = vmax.xlane.f32.xlu0 %v211
    %v213 = vpop.xlane.xlu0 %212
    %v214 = vsel %vm201, %v188, -inf
    %215 = vmax.xlane.f32.xlu0 %v214
    %v216 = vpop.xlane.xlu0 %215
    %v217 = vsel %vm201, %v193, -inf
    %218 = vmax.xlane.f32.xlu0 %v217
    %v219 = vpop.xlane.xlu0 %218
    %v220 = vsel %vm201, %v198, -inf
    %221 = vmax.xlane.f32.xlu0 %v220
    %v222 = vpop.xlane.xlu0 %221
    %v223 = vsub.f32 %v168, %v204
    %v224 = vsub.f32 %v173, %v207
    %v225 = vsub.f32 %v178, %v210
    %v226 = vsub.f32 %v183, %v213
    %v227 = vsub.f32 %v188, %v216
    %v228 = vsub.f32 %v193, %v219
    %v229 = vsub.f32 %v198, %v222
    %v230 = vmul.f32 %v223, 1.442695
    %v231 = vpow.pop %v230
    %v232 = vmul.f32 %v224, 1.442695
    %v233 = vpow.pop %v232
    %v234 = vmul.f32 %v225, 1.442695
    %v235 = vpow.pop %v234
    %v236 = vmul.f32 %v226, 1.442695
    %v237 = vpow.pop %v236
    %v238 = vmul.f32 %v227, 1.442695
    %v239 = vpow.pop %v238
    %v240 = vmul.f32 %v228, 1.442695
    %v241 = vpow.pop %v240
    %v242 = vmul.f32 %v229, 1.442695
    %v243 = vpow.pop %v242
    %v244 = vsel %vm201, %v231, 0.0
    %245 = vadd.xlane.f32.xlu0 %v244
    %v246 = vpop.xlane.xlu0 %245
    %v247 = vsel %vm201, %v233, 0.0
    %248 = vadd.xlane.f32.xlu0 %v247
    %v249 = vpop.xlane.xlu0 %248
    %v250 = vsel %vm201, %v235, 0.0
    %251 = vadd.xlane.f32.xlu0 %v250
    %v252 = vpop.xlane.xlu0 %251
    %v253 = vsel %vm201, %v237, 0.0
    %254 = vadd.xlane.f32.xlu0 %v253
    %v255 = vpop.xlane.xlu0 %254
    %v256 = vsel %vm201, %v239, 0.0
    %257 = vadd.xlane.f32.xlu0 %v256
    %v258 = vpop.xlane.xlu0 %257
    %v259 = vsel %vm201, %v241, 0.0
    %260 = vadd.xlane.f32.xlu0 %v259
    %v261 = vpop.xlane.xlu0 %260
    %v262 = vsel %vm201, %v243, 0.0
    %263 = vadd.xlane.f32.xlu0 %v262
    %v264 = vpop.xlane.xlu0 %263
    %v265 = vrcp.pop %v246
    %v266 = vrcp.pop %v249
    %v267 = vrcp.pop %v252
    %v268 = vrcp.pop %v255
    %v269 = vrcp.pop %v258
    %v270 = vrcp.pop %v261
    %v271 = vrcp.pop %v264
    %v272 = vld [vmem:[%s3] sm:$0xff]
    %v273 = vld [vmem:[%s3 + $0x8] sm:$0xff]
    %v274 = vld [vmem:[%s3 + $0x10] sm:$0xff]
    %v275 = vld [vmem:[%s3 + $0x18] sm:$0xff]
    %v276 = vld [vmem:[%s3 + $0x20] sm:$0xff]
    %v277 = vld [vmem:[%s3 + $0x28] sm:$0xff]
    %v278 = vld [vmem:[%s3 + $0x30] sm:$0xff]
    %v279 = vmul.f32 %v272, %v231
    %v280 = vmul.f32 %v273, %v233
    %v281 = vmul.f32 %v274, %v235
    %v282 = vmul.f32 %v275, %v237
    %v283 = vmul.f32 %v276, %v239
    %v284 = vmul.f32 %v277, %v241
    %v285 = vmul.f32 %v278, %v243
    %v287 = vsel %vm201, %v279, 0
    %v290 = vsel %vm201, %v280, 0
    %v293 = vsel %vm201, %v281, 0
    %v296 = vsel %vm201, %v282, 0
    %v299 = vsel %vm201, %v283, 0
    %v302 = vsel %vm201, %v284, 0
    %v305 = vsel %vm201, %v285, 0
    %307 = vmatprep.subr.mxu0 0.0
    %308 = vmatpush1.msra.mxu0 0.0
    %309 = vmatprep.subr.mxu0 0.0
    %310 = vmatpush1.msra.mxu0 0.0
    %311 = vmatprep.subr.mxu0 0.0
    %312 = vmatpush1.msra.mxu0 0.0
    %313 = vmatprep.subr.mxu0 0.0
    %314 = vmatpush1.msra.mxu0 0.0
    %315 = vmatprep.subr.mxu0 0.0
    %316 = vmatpush1.msra.mxu0 0.0
    %317 = vmatprep.subr.mxu0 0.0
    %318 = vmatpush1.msra.mxu0 0.0
    %319 = vmatprep.subr.mxu0 0.0
    %320 = vmatpush1.msra.mxu0 0.0
    %321 = vmatprep.subr.mxu0 0.0
    %322 = vmatpush1.msra.mxu0 0.0
    %323 = vmatprep.subr.mxu0 0.0
    %324 = vmatpush1.msra.mxu0 0.0
    %325 = vmatprep.subr.mxu0 0.0
    %326 = vmatpush1.msra.mxu0 %v50
    %327 = vmatprep.subr.mxu0 0.0
    %328 = vmatpush1.msra.mxu0 %v49
    %329 = vmatprep.subr.mxu0 0.0
    %330 = vmatpush1.msra.mxu0 %v48
    %331 = vmatprep.subr.mxu0 0.0
    %332 = vmatpush1.msra.mxu0 %v47
    %333 = vmatprep.subr.mxu0 0.0
    %334 = vmatpush1.msra.mxu0 %v46
    %335 = vmatprep.subr.mxu0 0.0
    %336 = vmatpush1.msra.mxu0 %v45
    %337 = vmatprep.subr.mxu0 0.0
    %338 = vmatpush1.msra.mxu0 %v44
    %339 = vmatprep.subr.mxu0 0.0
    %340 = vmatpush2.msra.mxu0 0.0
    %341 = vmatprep.subr.mxu0 0.0
    %342 = vmatpush2.msra.mxu0 0.0
    %343 = vmatprep.subr.mxu0 0.0
    %344 = vmatpush2.msra.mxu0 0.0
    %345 = vmatprep.subr.mxu0 0.0
    %346 = vmatpush2.msra.mxu0 0.0
    %347 = vmatprep.subr.mxu0 0.0
    %348 = vmatpush2.msra.mxu0 0.0
    %349 = vmatprep.subr.mxu0 0.0
    %350 = vmatpush2.msra.mxu0 0.0
    %351 = vmatprep.subr.mxu0 0.0
    %352 = vmatpush2.msra.mxu0 0.0
    %353 = vmatprep.subr.mxu0 0.0
    %354 = vmatpush2.msra.mxu0 0.0
    %355 = vmatprep.subr.mxu0 0.0
    %356 = vmatpush2.msra.mxu0 0.0
    %357 = vmatprep.subr.mxu0 0.0
    %358 = vmatpush2.msra.mxu0 0.0
    %359 = vmatprep.subr.mxu0 0.0
    %360 = vmatpush2.msra.mxu0 0.0
    %361 = vmatprep.subr.mxu0 0.0
    %362 = vmatpush2.msra.mxu0 0.0
    %363 = vmatprep.subr.mxu0 0.0
    %364 = vmatpush2.msra.mxu0 0.0
    %365 = vmatprep.subr.mxu0 0.0
    %366 = vmatpush2.msra.mxu0 0.0
    %367 = vmatprep.subr.mxu0 0.0
    %368 = vmatpush2.msra.mxu0 0.0
    %369 = vmatprep.subr.mxu0 0.0
    %370 = vmatpush2.msra.mxu0 0.0
    %371 = vmatprep.mubr.f32.mxu0 0.0
    %372 = vmatmul.mubr.f32.gmra.mxu0 %v287
    %v373 = vpop.f32.mrf.mxu0
    %v374 = vadd.f32 0.0, %v373
    %v375 = vpop.f32.mrf.mxu0
    %376 = vmatprep.mubr.f32.mxu0 0.0
    %377 = vmatmul.mubr.f32.gmra.mxu0 %v290
    %v378 = vpop.f32.mrf.mxu0
    %v379 = vadd.f32 0.0, %v378
    %v380 = vpop.f32.mrf.mxu0
    %381 = vmatprep.mubr.f32.mxu0 0.0
    %382 = vmatmul.mubr.f32.gmra.mxu0 %v293
    %v383 = vpop.f32.mrf.mxu0
    %v384 = vadd.f32 0.0, %v383
    %v385 = vpop.f32.mrf.mxu0
    %386 = vmatprep.mubr.f32.mxu0 0.0
    %387 = vmatmul.mubr.f32.gmra.mxu0 %v296
    %v388 = vpop.f32.mrf.mxu0
    %v389 = vadd.f32 0.0, %v388
    %v390 = vpop.f32.mrf.mxu0
    %391 = vmatprep.mubr.f32.mxu0 0.0
    %392 = vmatmul.mubr.f32.gmra.mxu0 %v299
    %v393 = vpop.f32.mrf.mxu0
    %v394 = vadd.f32 0.0, %v393
    %v395 = vpop.f32.mrf.mxu0
    %396 = vmatprep.mubr.f32.mxu0 0.0
    %397 = vmatmul.mubr.f32.gmra.mxu0 %v302
    %v398 = vpop.f32.mrf.mxu0
    %v399 = vadd.f32 0.0, %v398
    %v400 = vpop.f32.mrf.mxu0
    %401 = vmatprep.mubr.f32.mxu0 0.0
    %402 = vmatmul.mubr.f32.gmra.mxu0 %v305
    %v403 = vpop.f32.mrf.mxu0
    %v404 = vadd.f32 0.0, %v403
    %v405 = vpop.f32.mrf.mxu0
    %406 = vdwg.mxu0
    %v407 = vmul.f32 %v374, %v265
    %v408 = vmul.f32 %v379, %v266
    %v409 = vmul.f32 %v384, %v267
    %v410 = vmul.f32 %v389, %v268
    %v411 = vmul.f32 %v394, %v269
    %v412 = vmul.f32 %v399, %v270
    %v413 = vmul.f32 %v404, %v271
    %414 = vst.msk [vmem:[%s5] sm:$0xff] %vm58, %v407
    %415 = vst.msk [vmem:[%s5 + $0x8] sm:$0xff] %vm58, %v408
    %416 = vst.msk [vmem:[%s5 + $0x10] sm:$0xff] %vm58, %v409
    %417 = vst.msk [vmem:[%s5 + $0x18] sm:$0xff] %vm58, %v410
    %418 = vst.msk [vmem:[%s5 + $0x20] sm:$0xff] %vm58, %v411
    %419 = vst.msk [vmem:[%s5 + $0x28] sm:$0xff] %vm58, %v412
    %420 = vst.msk [vmem:[%s5 + $0x30] sm:$0xff] %vm58, %v413
    %v421 = vmul.f32 %v281, %v267
    %v422 = vmul.f32 %v282, %v268
    %v423 = vmul.f32 %v285, %v271
    %v425 = vrot.slane %v423, 4
    %426 = vrot.lane.b32.xlu0 %v425, 100
    %v427 = vpop.permute.xlu0 %426
    %v429 = vadd.f32 %v421, %v427
    %v430 = vadd.f32 %v422, %v427
    %v431 = vmul.f32 %v429, 0.5
    %v432 = vmul.f32 %v430, 0.5
    %435 = vrot.lane.b32.xlu0 %v431, 107
    %v436 = vpop.permute.xlu0 %435
    %437 = vrot.lane.b32.xlu0 %v432, 107
    %v438 = vpop.permute.xlu0 %437
    %vm441 = vcmask 56325
    %442 = vst.msk [vmem:[#allocation2 - $0x5] sm:$0xe0] %vm441, %v436
    %vm443 = vcmask 52224
    %444 = vst.msk [vmem:[#allocation2 + $0x3] sm:$0xf] %vm443, %v438
    // Predicated region
    $region22: #{_lambda_.1} parent=1 // pred_check
      _
    $region23: #{_lambda_.1} parent=1 // pred_check_branch
      %446 = sbr.rel (0) target = $region25
    $region24: #{_lambda_.1} parent=1 // pred_region
      _
    $region25: #{_lambda_.1} parent=1 // pred_fallthru
      _
    // Predicated region
    $region26: #{_lambda_.1} parent=1 // pred_check
      _
    $region27: #{_lambda_.1} parent=1 // pred_check_branch
      %448 = sbr.rel (0) target = $region29
    $region28: #{_lambda_.1} parent=1 // pred_region
      %s450 = ssub.s32 128, 128
      %451 = vsyncadd [#allocation3], %s450
      %s453 = sshll.u32 [#allocation2], 4
      %s454 = int_to_ptr.vmem [resolvable:$true] %s453
      %456 = dma.vmem_to_hbm [thread:$0]  %s454, 128, %s6, [#allocation3]
    $region29: #{_lambda_.1} parent=1 // pred_fallthru
      _
    // Predicated region
    $region30: #{_lambda_.1} parent=1 // pred_check
      _
    $region31: #{_lambda_.1} parent=1 // pred_check_branch
      %458 = sbr.rel (0) target = $region33
    $region32: #{_lambda_.1} parent=1 // pred_region
      _
    $region33: #{_lambda_.1} parent=1 // pred_fallthru
      _
    // Predicated region
    $region34: #{_lambda_.1} parent=1 // pred_check
      _
    $region35: #{_lambda_.1} parent=1 // pred_check_branch
      %460 = sbr.rel (0) target = $region37
    $region36: #{_lambda_.1} parent=1 // pred_region
      %461 = dma.done [#allocation3], 128
    $region37: #{_lambda_.1} parent=1 // pred_fallthru
      _
    %462 = vsyncpa [#allocation3], 1

</llo_original>
